<compile_context>
chip_gen: v6e
topology: v6e:2x2x1
jax: 0.10.0
libtpu: 0.0.40
codegen_flags: <defaults>
</compile_context>

<pallas_src>
import jax
import jax.numpy as jnp
from jax import lax
from jax.experimental import pallas as pl
from jax.experimental.pallas import tpu as pltpu


def _round_up(x, m):
    return (x + m - 1) // m * m


def _vmem_capacity_bytes():
    """Per-core VMEM capacity; conservative 64 MiB (v7x) fallback."""
    try:
        info = pltpu.get_tpu_info()
        for attr in ("vmem_capacity_bytes", "vmem_bytes", "vmem_size_bytes"):
            v = getattr(info, attr, None)
            if v:
                return int(v)
    except Exception:
        pass
    return 64 << 20


def _pick_tm(requested, M):
    """Row-tile size: multiple of 8, <= padded M, >= 2 tiles when M allows
    (so the 'parallel' axis can shard across v7x's two TensorCores)."""
    t = min(_round_up(max(requested, 8), 8), _round_up(M, 8))
    if M > 8 and _round_up(M, t) // t < 2:
        t = max(8, _round_up((M + 1) // 2, 8))
    return t


def _resident_working_set(tm, d_model, d_ff, x_itemsize, out_itemsize):
    w_buf = 2 * (2 * d_ff * d_model * 2)       # W1 + W2^T bf16, x2 (dbl-buffer)
    x_buf = 2 * tm * d_model * x_itemsize      # double-buffered input tile
    o_buf = 2 * tm * d_model * out_itemsize    # double-buffered output tile
    h_tmp = tm * d_ff * (4 + 2)                # f32 h + bf16 copy for 2nd matmul
    return w_buf + x_buf + o_buf + h_tmp + (1 << 20)


def _streaming_working_set(tm, tk, d_model, x_itemsize, out_itemsize, use_scratch):
    w_buf = 2 * 2 * (tk * d_model * 2)         # 2 weight chunks x 2 buffers, bf16
    x_buf = 2 * tm * d_model * x_itemsize
    o_buf = 2 * tm * d_model * out_itemsize
    h_tmp = tm * tk * (4 + 2)
    acc = tm * d_model * 4 if use_scratch else 0
    return w_buf + x_buf + o_buf + h_tmp + acc + (1 << 20)


# ----------------------------------------------------------------------------
# Kernels
# ----------------------------------------------------------------------------

def _ffn_resident_kernel(x_ref, w1_ref, b1_ref, w2t_ref, b2_ref, o_ref):
    # x_ref:   (tm, d_model)      input dtype (cast to bf16 here, not in HBM)
    # w1_ref:  (d_ff, d_model)    bf16, PyTorch layout (NT matmul, MXU-native)
    # b1_ref:  (1, d_ff)          f32
    # w2t_ref: (d_ff, d_model)    bf16, W2 transposed -> canonical (K, N)
    # b2_ref:  (1, d_model)       f32
    x = x_ref[...].astype(jnp.bfloat16)
    h = lax.dot_general(
        x, w1_ref[...],
        dimension_numbers=(((1,), (1,)), ((), ())),
        preferred_element_type=jnp.float32)
    h = jnp.maximum(h + b1_ref[...], 0.0)            # relu; dropout = identity
    out = lax.dot_general(
        h.astype(w2t_ref.dtype), w2t_ref[...],
        dimension_numbers=(((1,), (0,)), ((), ())),
        preferred_element_type=jnp.float32)
    o_ref[...] = (out + b2_ref[...]).astype(o_ref.dtype)


def _make_ffn_stream_kernel(acc_in_out: bool):
    """Streaming kernel. If acc_in_out (f32 output), accumulate directly into
    o_ref (resident across k); otherwise use an f32 VMEM scratch accumulator."""

    def kernel(x_ref, w1_ref, b1_ref, w2t_ref, b2_ref, o_ref, *scratch):
        acc_ref = o_ref if acc_in_out else scratch[0]
        k = pl.program_id(1)

        @pl.when(k == 0)
        def _():
            acc_ref[...] = jnp.zeros_like(acc_ref)

        x = x_ref[...].astype(jnp.bfloat16)
        h = lax.dot_general(
            x, w1_ref[...],
            dimension_numbers=(((1,), (1,)), ((), ())),
            preferred_element_type=jnp.float32)
        h = jnp.maximum(h + b1_ref[...], 0.0)         # relu; dropout = identity
        acc_ref[...] += lax.dot_general(
            h.astype(w2t_ref.dtype), w2t_ref[...],
            dimension_numbers=(((1,), (0,)), ((), ())),
            preferred_element_type=jnp.float32)

        @pl.when(k == pl.num_programs(1) - 1)
        def _():
            if acc_in_out:
                o_ref[...] = acc_ref[...] + b2_ref[...]
            else:
                o_ref[...] = (acc_ref[...] + b2_ref[...]).astype(o_ref.dtype)

    return kernel


# ----------------------------------------------------------------------------
# Wrapper
# ----------------------------------------------------------------------------

def feed_forward_block(x, w1, b1, w2, b2, *, tm=None, tk_ff=1024,
                       weights_resident=None, vmem_budget_bytes=None):
    """FFN forward (eval-mode dropout). PyTorch nn.Linear conventions:
    x: (batch, seq, d_model); w1: (d_ff, d_model), b1: (d_ff,),
    w2: (d_model, d_ff), b2: (d_model,)."""
    batch, seq, d_model = x.shape
    d_ff = w1.shape[0]
    M = batch * seq
    out_dtype = x.dtype
    x_itemsize = jnp.dtype(x.dtype).itemsize
    out_itemsize = jnp.dtype(out_dtype).itemsize

    vmem_cap = _vmem_capacity_bytes()
    budget = (int(vmem_budget_bytes) if vmem_budget_bytes is not None
              else int(vmem_cap * 0.6))

    # One-time layout / dtype prep (bf16 MXU weights; W2 transposed so that
    # streaming chunks are row-contiguous and the 2nd matmul is (K, N)).
    w1_bf = w1.astype(jnp.bfloat16)                   # (d_ff, d_model)
    w2t_bf = jnp.transpose(w2).astype(jnp.bfloat16)   # (d_ff, d_model)
    b1r = b1.astype(jnp.float32).reshape(1, d_ff)
    b2r = b2.astype(jnp.float32).reshape(1, d_model)

    # ---- Mode decision ------------------------------------------------------
    tm_res = _pick_tm(256 if tm is None else tm, M)
    resident_ws = _resident_working_set(tm_res, d_model, d_ff,
                                        x_itemsize, out_itemsize)
    if weights_resident is None:
        weights_resident = resident_ws <= budget

    x2d = x.reshape(M, d_model)

    if weights_resident:
        tm_ = tm_res
        M_pad = _round_up(M, tm_)
        if M_pad != M:
            x2d = jnp.pad(x2d, ((0, M_pad - M), (0, 0)))
        grid = (M_pad // tm_,)
        d_ff_used = d_ff
        est_ws = _resident_working_set(tm_, d_model, d_ff, x_itemsize,
                                       out_itemsize)

        weight_bytes = 2 * d_ff * d_model * 2                # read exactly once
        cost = pl.CostEstimate(
            flops=4 * M_pad * d_model * d_ff_used,
            transcendentals=0,
            bytes_accessed=int(M_pad * d_model * x_itemsize + weight_bytes
                               + b1r.size * 4 + b2r.size * 4
                               + M_pad * d_model * out_itemsize))

        grid_spec = pltpu.PrefetchScalarGridSpec(
            num_scalar_prefetch=0,
            grid=grid,
            in_specs=[
                pl.BlockSpec((tm_, d_model), lambda i: (i, 0)),     # x rows
                pl.BlockSpec((d_ff, d_model), lambda i: (0, 0)),    # W1 (whole)
                pl.BlockSpec((1, d_ff), lambda i: (0, 0)),          # b1
                pl.BlockSpec((d_ff, d_model), lambda i: (0, 0)),    # W2^T (whole)
                pl.BlockSpec((1, d_model), lambda i: (0, 0)),       # b2
            ],
            out_specs=pl.BlockSpec((tm_, d_model), lambda i: (i, 0)),
            scratch_shapes=[],
        )
        kernel = _ffn_resident_kernel
        dim_sem = ("parallel",)
    else:
        # Streaming: tk is a multiple of 128 (lane-aligned b1 chunks), d_ff is
        # zero-padded to a multiple of tk.
        tk = _round_up(min(tk_ff, _round_up(d_ff, 128)), 128)
        tm_ = _pick_tm(1024 if tm is None else tm, M)
        use_scratch = out_dtype != jnp.float32
        # Shrink tk first, then tm, until the working set fits the budget.
        while _streaming_working_set(tm_, tk, d_model, x_itemsize,
                                     out_itemsize, use_scratch) > budget:
            if tk > 128:
                tk = max(128, _round_up(tk // 2, 128))
            elif tm_ > 64:
                tm_ = max(64, _round_up(tm_ // 2, 8))
            else:
                break

        d_ff_pad = _round_up(d_ff, tk)
        if d_ff_pad != d_ff:
            pad = d_ff_pad - d_ff
            w1_bf = jnp.pad(w1_bf, ((0, pad), (0, 0)))     # zero rows -> h = 0
            w2t_bf = jnp.pad(w2t_bf, ((0, pad), (0, 0)))   # zero rows -> +0
            b1r = jnp.pad(b1r, ((0, 0), (0, pad)))

        M_pad = _round_up(M, tm_)
        if M_pad != M:
            x2d = jnp.pad(x2d, ((0, M_pad - M), (0, 0)))

        grid = (M_pad // tm_, d_ff_pad // tk)
        d_ff_used = d_ff_pad
        est_ws = _streaming_working_set(tm_, tk, d_model, x_itemsize,
                                        out_itemsize, use_scratch)

        weight_bytes = 2 * d_ff_pad * d_model * 2
        cost = pl.CostEstimate(
            flops=4 * M_pad * d_model * d_ff_used,
            transcendentals=0,
            bytes_accessed=int(M_pad * d_model * x_itemsize
                               + grid[0] * weight_bytes     # re-read per row tile
                               + b1r.size * 4 + b2r.size * 4
                               + M_pad * d_model * out_itemsize))

        grid_spec = pltpu.PrefetchScalarGridSpec(
            num_scalar_prefetch=0,
            grid=grid,
            in_specs=[
                pl.BlockSpec((tm_, d_model), lambda i, k: (i, 0)),   # x rows
                pl.BlockSpec((tk, d_model), lambda i, k: (k, 0)),    # W1 chunk
                pl.BlockSpec((1, tk), lambda i, k: (0, k)),          # b1 chunk
                pl.BlockSpec((tk, d_model), lambda i, k: (k, 0)),    # W2^T chunk
                pl.BlockSpec((1, d_model), lambda i, k: (0, 0)),     # b2
            ],
            out_specs=pl.BlockSpec((tm_, d_model), lambda i, k: (i, 0)),
            scratch_shapes=([pltpu.VMEM((tm_, d_model), jnp.float32)]
                            if use_scratch else []),
        )
        kernel = _make_ffn_stream_kernel(acc_in_out=not use_scratch)
        dim_sem = ("parallel", "arbitrary")

    vmem_limit = int(min(max(est_ws + (8 << 20), 32 << 20),
                         int(vmem_cap * 0.9)))

    out2d = pl.pallas_call(
        kernel,
        out_shape=jax.ShapeDtypeStruct((M_pad, d_model), out_dtype),
        grid_spec=grid_spec,
        compiler_params=pltpu.CompilerParams(
            dimension_semantics=dim_sem,
            vmem_limit_bytes=vmem_limit),
        cost_estimate=cost,
    )(x2d, w1_bf, b1r, w2t_bf, b2r)

    if M_pad != M:
        out2d = out2d[:M]
    return out2d.reshape(batch, seq, d_model)


# ----------------------------------------------------------------------------
# Test
# ----------------------------------------------------------------------------

if __name__ == "__main__":
    # d_ff deliberately not a multiple of 128 to exercise the zero-padding
    # path in streaming mode.
    batch, seq, d_model, d_ff = 2, 64, 128, 320
    key = jax.random.PRNGKey(0)
    kx, k1, k2, k3, k4 = jax.random.split(key, 5)

    x = jax.random.normal(kx, (batch, seq, d_model), dtype=jnp.float32)
    # Deterministic parameters, PyTorch nn.Linear shapes.
    w1 = jax.random.normal(k1, (d_ff, d_model), dtype=jnp.float32) * 0.1
    b1 = jax.random.normal(k2, (d_ff,), dtype=jnp.float32) * 0.1
    w2 = jax.random.normal(k3, (d_model, d_ff), dtype=jnp.float32) * 0.1
    b2 = jax.random.normal(k4, (d_model,), dtype=jnp.float32) * 0.1

    # Reference in f32 (eval-mode dropout == identity). bf16 MXU inputs =>
    # tolerance loosened vs. the pure-f32 reference (expected, not a bug).
    ref = jnp.maximum(x @ w1.T + b1, 0.0) @ w2.T + b2
    ref_scale = jnp.max(jnp.abs(ref)) + 1e-6

    # 1) Auto mode: weights fit in VMEM -> resident path (weights DMA'd once,
    #    1-D row-parallel grid, >= 2 row tiles for megacore).
    out_res = jax.block_until_ready(feed_forward_block(x, w1, b1, w2, b2))
    err_res = jnp.max(jnp.abs(out_res - ref)) / ref_scale
    assert err_res < 5e-2, f"resident path rel err too large: {err_res}"

    # 2) Forced streaming path: d_ff padded 320 -> 384, 3 reduction steps,
    #    f32 accumulation directly in the (resident) output tile.
    out_str = jax.block_until_ready(
        feed_forward_block(x, w1, b1, w2, b2, weights_resident=False,
                           tm=64, tk_ff=128))
    err_str = jnp.max(jnp.abs(out_str - ref)) / ref_scale
    assert err_str < 5e-2, f"streaming path rel err too large: {err_str}"

    # 3) Forced streaming with bf16 input/output (exercises the f32 VMEM
    #    accumulator scratch used for low-precision outputs).
    out_bf = jax.block_until_ready(
        feed_forward_block(x.astype(jnp.bfloat16), w1, b1, w2, b2,
                           weights_resident=False, tm=64, tk_ff=128))
    err_bf = jnp.max(jnp.abs(out_bf.astype(jnp.float32) - ref)) / ref_scale
    assert err_bf < 5e-2, f"bf16 streaming path rel err too large: {err_bf}"

    print("KERNEL_OK")
</pallas_src>

<mosaic_0001>
module attributes {stable_mosaic.version = 11 : i64} {
  func.func @_ffn_resident_kernel(%arg0: i32, %arg1: memref<64x128xf32, #tpu.memory_space<vmem>>, %arg2: memref<320x128xbf16, #tpu.memory_space<vmem>>, %arg3: memref<1x320xf32, #tpu.memory_space<vmem>>, %arg4: memref<320x128xbf16, #tpu.memory_space<vmem>>, %arg5: memref<1x128xf32, #tpu.memory_space<vmem>>, %arg6: memref<64x128xf32, #tpu.memory_space<vmem>>) attributes {dimension_semantics = [#tpu.dimension_semantics<parallel>], iteration_bounds = array<i64: 2>, scalar_prefetch = 0 : i64, scratch_operands = 0 : i64, tpu.core_type = #tpu.core_type<tc>, window_params = [{transform_indices = @transform_0, window_bounds = array<i64: 64, 128>}, {pipeline_mode = #tpu.pipeline_mode<synchronous>, transform_indices = @transform_1, window_bounds = array<i64: 320, 128>}, {pipeline_mode = #tpu.pipeline_mode<synchronous>, transform_indices = @transform_2, window_bounds = array<i64: 1, 320>}, {pipeline_mode = #tpu.pipeline_mode<synchronous>, transform_indices = @transform_3, window_bounds = array<i64: 320, 128>}, {pipeline_mode = #tpu.pipeline_mode<synchronous>, transform_indices = @transform_4, window_bounds = array<i64: 1, 128>}, {transform_indices = @transform_5, window_bounds = array<i64: 64, 128>}]} {
    %c0 = arith.constant 0 : index
    %c0_0 = arith.constant 0 : index
    %0 = vector.load %arg1[%c0, %c0_0] : memref<64x128xf32, #tpu.memory_space<vmem>>, vector<64x128xf32>
    %1 = arith.truncf %0 : vector<64x128xf32> to vector<64x128xbf16>
    %c0_1 = arith.constant 0 : index
    %c0_2 = arith.constant 0 : index
    %2 = vector.load %arg2[%c0_1, %c0_2] : memref<320x128xbf16, #tpu.memory_space<vmem>>, vector<320x128xbf16>
    %cst = arith.constant dense<0.000000e+00> : vector<64x320xf32>
    %3 = tpu.matmul %1, %2, %cst {dimension_numbers = #tpu.dot_dimension_numbers<[1], [1], [0], [0], [0, 0, 1, 0], [], []>} : vector<64x128xbf16>, vector<320x128xbf16>, vector<64x320xf32> -> vector<64x320xf32>
    %c0_3 = arith.constant 0 : index
    %c0_4 = arith.constant 0 : index
    %4 = vector.load %arg3[%c0_3, %c0_4] : memref<1x320xf32, #tpu.memory_space<vmem>>, vector<1x320xf32>
    %5 = vector.broadcast %4 : vector<1x320xf32> to vector<64x320xf32>
    %6 = arith.addf %3, %5 : vector<64x320xf32>
    %cst_5 = arith.constant 0.000000e+00 : f32
    %7 = vector.broadcast %cst_5 : f32 to vector<64x320xf32>
    %8 = arith.maximumf %6, %7 : vector<64x320xf32>
    %9 = arith.truncf %8 : vector<64x320xf32> to vector<64x320xbf16>
    %c0_6 = arith.constant 0 : index
    %c0_7 = arith.constant 0 : index
    %10 = vector.load %arg4[%c0_6, %c0_7] : memref<320x128xbf16, #tpu.memory_space<vmem>>, vector<320x128xbf16>
    %cst_8 = arith.constant dense<0.000000e+00> : vector<64x128xf32>
    %11 = tpu.matmul %9, %10, %cst_8 {dimension_numbers = #tpu.dot_dimension_numbers<[1], [0], [0], [1], [0, 0, 1, 1], [], []>} : vector<64x320xbf16>, vector<320x128xbf16>, vector<64x128xf32> -> vector<64x128xf32>
    %c0_9 = arith.constant 0 : index
    %c0_10 = arith.constant 0 : index
    %12 = vector.load %arg5[%c0_9, %c0_10] : memref<1x128xf32, #tpu.memory_space<vmem>>, vector<1x128xf32>
    %13 = vector.broadcast %12 : vector<1x128xf32> to vector<64x128xf32>
    %14 = arith.addf %11, %13 : vector<64x128xf32>
    %c0_11 = arith.constant 0 : index
    %c0_12 = arith.constant 0 : index
    %15 = vector.load %arg6[%c0_11, %c0_12] : memref<64x128xf32, #tpu.memory_space<vmem>>, vector<64x128xf32>
    tpu.vector_store %arg6[%c0_11, %c0_12], %14 {strides = array<i32>} : memref<64x128xf32, #tpu.memory_space<vmem>>, vector<64x128xf32>,
    return
  }
  func.func @transform_0(%arg0: i32) -> (i32, i32) {
    %c0_i32 = arith.constant 0 : i32
    %c0_i32_0 = arith.constant 0 : i32
    return %arg0, %c0_i32 : i32, i32
  }
  func.func @transform_1(%arg0: i32) -> (i32, i32) {
    %c0_i32 = arith.constant 0 : i32
    %c0_i32_0 = arith.constant 0 : i32
    %c0_i32_1 = arith.constant 0 : i32
    return %c0_i32, %c0_i32_0 : i32, i32
  }
  func.func @transform_2(%arg0: i32) -> (i32, i32) {
    %c0_i32 = arith.constant 0 : i32
    %c0_i32_0 = arith.constant 0 : i32
    %c0_i32_1 = arith.constant 0 : i32
    return %c0_i32, %c0_i32_0 : i32, i32
  }
  func.func @transform_3(%arg0: i32) -> (i32, i32) {
    %c0_i32 = arith.constant 0 : i32
    %c0_i32_0 = arith.constant 0 : i32
    %c0_i32_1 = arith.constant 0 : i32
    return %c0_i32, %c0_i32_0 : i32, i32
  }
  func.func @transform_4(%arg0: i32) -> (i32, i32) {
    %c0_i32 = arith.constant 0 : i32
    %c0_i32_0 = arith.constant 0 : i32
    %c0_i32_1 = arith.constant 0 : i32
    return %c0_i32, %c0_i32_0 : i32, i32
  }
  func.func @transform_5(%arg0: i32) -> (i32, i32) {
    %c0_i32 = arith.constant 0 : i32
    %c0_i32_0 = arith.constant 0 : i32
    return %arg0, %c0_i32 : i32, i32
  }
}

</mosaic_0001>

<llo_original>
// kernel: tpu_custom_call.1
$region0: #{tpu_custom_call.1}
  #allocation0 [shape = 'u32[]', space=smem, size = 0x4, offset = 0x4, fixed_abs, tag = 'smem constant byte address 0x4 - core index']
  #allocation1 [shape = 'u32[144,128]{1,0:T(1,128)}', space=vmem, size = 0x12000, scoped, tag = 'internal scratch']
  %s0 = inlined_call_operand.hbm [shape: f32[128,128], index: 0, kind: input, shape index: {}]
  %s1 = inlined_call_operand.hbm [shape: bf16[320,128], index: 1, kind: input, shape index: {}]
  %s2 = inlined_call_operand.vmem [shape: f32[1,320], index: 2, kind: input, shape index: {}]
  %s3 = inlined_call_operand.hbm [shape: bf16[320,128], index: 3, kind: input, shape index: {}]
  %s4 = inlined_call_operand.vmem [shape: f32[1,128], index: 4, kind: input, shape index: {}]
  %s5 = inlined_call_operand.hbm [shape: f32[128,128], index: 5, kind: output, shape index: {}]
  %s6 = sld [smem:[#allocation0]]
  $region65: #{tpu_custom_call.1} parent=0
    _
  %s8 = ssub.s32 1, %s6
  %s9 = scalar_select 0, %s8, %s6
  $region1: #{tpu_custom_call.1} parent=0
    #allocation2 [shape = 'u8[65536]{0}', space=vmem, size = 0x10000, scoped, tag = 'input window, operand 0']
    #allocation3 [shape = 's32[2]{0}', space=sflag, size = 0x8, scoped, tag = 'scoped memory for tpu_custom_call.1']
    #allocation4 [shape = 's32[2]{0}', space=sflag, size = 0x8, scoped, tag = 'scoped memory for tpu_custom_call.1']
    #allocation5 [shape = 'u8[81920]{0}', space=vmem, size = 0x14000, scoped, tag = 'input window, operand 1, single buffered']
    #allocation6 [shape = 's32[1]{0}', space=sflag, size = 0x4, scoped, tag = 'scoped memory for tpu_custom_call.1']
    #allocation7 [shape = 'u8[81920]{0}', space=vmem, size = 0x14000, scoped, tag = 'input window, operand 3, single buffered']
    #allocation8 [shape = 'u8[65536]{0}', space=vmem, size = 0x10000, scoped, tag = 'output window, operand 0']
    %10 = vsyncpa [#allocation3], 0
    %s11 = scalar_lea.sflag [#allocation3], 1
    %12 = vsyncpa %s11, 0
    %13 = vsyncpa [#allocation6], 0
    %14 = vsyncpa [#allocation4], 0
    %s15 = scalar_lea.sflag [#allocation4], 1
    %16 = vsyncpa %s15, 0
    loop: start=0, step=1, limit=4
    $region2: #{tpu_custom_call.1} parent=1 // loop_pre_header
      _
    $region3: #{tpu_custom_call.1} parent=1 // loop_header
      %s18 = sphi 0, %s22
      %p19 = scmp.ge.s32.totalorder %s18, 4
      %s28 = sphi 0, %s30
      %s31 = sphi 0, %s28
      %s32 = sphi 0, %s31
      %s48 = sphi 0, %s32
      %s52 = sphi 0, %s52
      %s54 = sphi 0, %s52
      %s55 = sphi 0, %s54
      %s69 = sphi 0, %s55
      %s73 = sphi 0, %s73
      %s75 = sphi 0, %s73
      %s76 = sphi 0, %s75
      %s90 = sphi 0, %s76
      %s94 = sphi 0, %s94
      %s96 = sphi 0, %s94
      %s97 = sphi 0, %s96
      %s111 = sphi 0, %s97
      %s115 = sphi 0, %s115
      %s117 = sphi 0, %s115
      %s118 = sphi 0, %s117
      %s132 = sphi 0, %s118
      %s138 = sphi 0, %s140
      %s141 = sphi 0, %s138
      %s142 = sphi 0, %s141
      %s158 = sphi 0, %s142
    $region4: #{tpu_custom_call.1} parent=1 // loop_header_branch
      %21 = sbr.rel (%p19) target = $region8
    $region5: #{tpu_custom_call.1} parent=1 // loop_body
      %s23 = ssub.s32 %s18, 1
      %s24 = ssub.s32 %s18, 2
      %s25 = sadd.s32 %s18, 1
      %s26 = ssub.s32 %s18, %s25
      %p27 = scmp.eq.s32.totalorder %s26, 0
      %s29 = sadd.s32 %s28, 1
      %s30 = scalar_select %p27, %s28, %s29
      %p33 = pneg %p27
      %p34 = scmp.eq.s32.totalorder %s18, 1
      %p35 = por %p33, %p34
      %p36 = scmp.ne.s32.totalorder %s28, %s31
      %p37 = scmp.eq.s32.totalorder %s18, 0
      %p38 = por %p36, %p37
      %p39 = scmp.ne.s32.totalorder %s28, %s31
      %p40 = scmp.eq.s32.totalorder %s23, 1
      %p41 = por %p39, %p40
      %p42 = scmp.ne.s32.totalorder %s31, %s32
      %p43 = scmp.eq.s32.totalorder %s23, 0
      %p44 = por %p42, %p43
      %p45 = scmp.ne.s32.totalorder %s31, %s32
      %p46 = scmp.eq.s32.totalorder %s24, 1
      %p47 = por %p45, %p46
      %p49 = scmp.ne.s32.totalorder %s32, %s48
      %p50 = scmp.eq.s32.totalorder %s24, 0
      %p51 = por %p49, %p50
      %s53 = sadd.s32 %s52, 1
      %p56 = scmp.eq.s32.totalorder %s18, 1
      %p57 = scmp.ne.s32.totalorder %s52, %s54
      %p58 = scmp.eq.s32.totalorder %s18, 0
      %p59 = por %p57, %p58
      %p60 = scmp.ne.s32.totalorder %s52, %s54
      %p61 = scmp.eq.s32.totalorder %s23, 1
      %p62 = por %p60, %p61
      %p63 = scmp.ne.s32.totalorder %s54, %s55
      %p64 = scmp.eq.s32.totalorder %s23, 0
      %p65 = por %p63, %p64
      %p66 = scmp.ne.s32.totalorder %s54, %s55
      %p67 = scmp.eq.s32.totalorder %s24, 1
      %p68 = por %p66, %p67
      %p70 = scmp.ne.s32.totalorder %s55, %s69
      %p71 = scmp.eq.s32.totalorder %s24, 0
      %p72 = por %p70, %p71
      %s74 = sadd.s32 %s73, 1
      %p77 = scmp.eq.s32.totalorder %s18, 1
      %p78 = scmp.ne.s32.totalorder %s73, %s75
      %p79 = scmp.eq.s32.totalorder %s18, 0
      %p80 = por %p78, %p79
      %p81 = scmp.ne.s32.totalorder %s73, %s75
      %p82 = scmp.eq.s32.totalorder %s23, 1
      %p83 = por %p81, %p82
      %p84 = scmp.ne.s32.totalorder %s75, %s76
      %p85 = scmp.eq.s32.totalorder %s23, 0
      %p86 = por %p84, %p85
      %p87 = scmp.ne.s32.totalorder %s75, %s76
      %p88 = scmp.eq.s32.totalorder %s24, 1
      %p89 = por %p87, %p88
      %p91 = scmp.ne.s32.totalorder %s76, %s90
      %p92 = scmp.eq.s32.totalorder %s24, 0
      %p93 = por %p91, %p92
      %s95 = sadd.s32 %s94, 1
      %p98 = scmp.eq.s32.totalorder %s18, 1
      %p99 = scmp.ne.s32.totalorder %s94, %s96
      %p100 = scmp.eq.s32.totalorder %s18, 0
      %p101 = por %p99, %p100
      %p102 = scmp.ne.s32.totalorder %s94, %s96
      %p103 = scmp.eq.s32.totalorder %s23, 1
      %p104 = por %p102, %p103
      %p105 = scmp.ne.s32.totalorder %s96, %s97
      %p106 = scmp.eq.s32.totalorder %s23, 0
      %p107 = por %p105, %p106
      %p108 = scmp.ne.s32.totalorder %s96, %s97
      %p109 = scmp.eq.s32.totalorder %s24, 1
      %p110 = por %p108, %p109
      %p112 = scmp.ne.s32.totalorder %s97, %s111
      %p113 = scmp.eq.s32.totalorder %s24, 0
      %p114 = por %p112, %p113
      %s116 = sadd.s32 %s115, 1
      %p119 = scmp.eq.s32.totalorder %s18, 1
      %p120 = scmp.ne.s32.totalorder %s115, %s117
      %p121 = scmp.eq.s32.totalorder %s18, 0
      %p122 = por %p120, %p121
      %p123 = scmp.ne.s32.totalorder %s115, %s117
      %p124 = scmp.eq.s32.totalorder %s23, 1
      %p125 = por %p123, %p124
      %p126 = scmp.ne.s32.totalorder %s117, %s118
      %p127 = scmp.eq.s32.totalorder %s23, 0
      %p128 = por %p126, %p127
      %p129 = scmp.ne.s32.totalorder %s117, %s118
      %p130 = scmp.eq.s32.totalorder %s24, 1
      %p131 = por %p129, %p130
      %p133 = scmp.ne.s32.totalorder %s118, %s132
      %p134 = scmp.eq.s32.totalorder %s24, 0
      %p135 = por %p133, %p134
      %s136 = ssub.s32 %s18, %s25
      %p137 = scmp.eq.s32.totalorder %s136, 0
      %s139 = sadd.s32 %s138, 1
      %s140 = scalar_select %p137, %s138, %s139
      %p143 = pneg %p137
      %p144 = scmp.eq.s32.totalorder %s18, 1
      %p145 = por %p143, %p144
      %p146 = scmp.ne.s32.totalorder %s138, %s141
      %p147 = scmp.eq.s32.totalorder %s18, 0
      %p148 = por %p146, %p147
      %p149 = scmp.ne.s32.totalorder %s138, %s141
      %p150 = scmp.eq.s32.totalorder %s23, 1
      %p151 = por %p149, %p150
      %p152 = scmp.ne.s32.totalorder %s141, %s142
      %p153 = scmp.eq.s32.totalorder %s23, 0
      %p154 = por %p152, %p153
      %p155 = scmp.ne.s32.totalorder %s141, %s142
      %p156 = scmp.eq.s32.totalorder %s24, 1
      %p157 = por %p155, %p156
      %p159 = scmp.ne.s32.totalorder %s142, %s158
      %p160 = scmp.eq.s32.totalorder %s24, 0
      %p161 = por %p159, %p160
      %p162 = scmp.le.s32.totalorder 1, %s18
      %p163 = scmp.lt.s32.totalorder %s18, 3
      %p164 = pnand %p162, %p163
      %p165 = pneg %p164
      // Predicated region
      $region9: #{tpu_custom_call.1} parent=5 // pred_check
        _
      $region10: #{tpu_custom_call.1} parent=5 // pred_check_branch
        %167 = sbr.rel (%p164) target = $region12
      $region11: #{tpu_custom_call.1} parent=5 // pred_region
        %s168 = ssub.s32 %s18, 1
        // Predicated region
        $region13: #{tpu_custom_call.1} parent=11 // pred_check
          %p169 = pneg %p65
        $region14: #{tpu_custom_call.1} parent=11 // pred_check_branch
          %171 = sbr.rel (%p169) target = $region16
        $region15: #{tpu_custom_call.1} parent=11 // pred_region
          %s173 = ssub.s32 2560, 2560
          %174 = vsyncadd [#allocation6], %s173
          %s175 = sshll.u32 [#allocation5], 4
          %s176 = int_to_ptr.vmem [resolvable:$true] %s175
          %181 = dma.hbm_to_vmem [thread:$0]  %s1, 2560, %s176, [#allocation6], 64, 64, 4
        $region16: #{tpu_custom_call.1} parent=11 // pred_fallthru
          _
        // Predicated region
        $region17: #{tpu_custom_call.1} parent=11 // pred_check
          %p182 = pneg %p86
        $region18: #{tpu_custom_call.1} parent=11 // pred_check_branch
          %184 = sbr.rel (%p182) target = $region20
        $region19: #{tpu_custom_call.1} parent=11 // pred_region
          _
        $region20: #{tpu_custom_call.1} parent=11 // pred_fallthru
          _
        // Predicated region
        $region21: #{tpu_custom_call.1} parent=11 // pred_check
          %p185 = pneg %p107
        $region22: #{tpu_custom_call.1} parent=11 // pred_check_branch
          %187 = sbr.rel (%p185) target = $region24
        $region23: #{tpu_custom_call.1} parent=11 // pred_region
          %s189 = ssub.s32 2560, 2560
          %190 = vsyncadd [#allocation6], %s189
          %s191 = sshll.u32 [#allocation7], 4
          %s192 = int_to_ptr.vmem [resolvable:$true] %s191
          %197 = dma.hbm_to_vmem [thread:$0]  %s3, 2560, %s192, [#allocation6], 64, 64, 4
        $region24: #{tpu_custom_call.1} parent=11 // pred_fallthru
          _
        // Predicated region
        $region25: #{tpu_custom_call.1} parent=11 // pred_check
          %p198 = pneg %p128
        $region26: #{tpu_custom_call.1} parent=11 // pred_check_branch
          %200 = sbr.rel (%p198) target = $region28
        $region27: #{tpu_custom_call.1} parent=11 // pred_region
          _
        $region28: #{tpu_custom_call.1} parent=11 // pred_fallthru
          _
      $region12: #{tpu_custom_call.1} parent=5 // pred_fallthru
        _
      %p201 = scmp.lt.s32.totalorder %s18, 2
      // Predicated region
      $region29: #{tpu_custom_call.1} parent=5 // pred_check
        %p202 = pneg %p201
      $region30: #{tpu_custom_call.1} parent=5 // pred_check_branch
        %204 = sbr.rel (%p202) target = $region32
      $region31: #{tpu_custom_call.1} parent=5 // pred_region
        // Predicated region
        $region33: #{tpu_custom_call.1} parent=31 // pred_check
          %p205 = pneg %p38
        $region34: #{tpu_custom_call.1} parent=31 // pred_check_branch
          %207 = sbr.rel (%p205) target = $region36
        $region35: #{tpu_custom_call.1} parent=31 // pred_region
          %s208 = sand.u32 %s28, 1
          %s209 = scalar_lea.sflag [#allocation3], %s208
          %s210 = sand.u32 %s28, 1
          %s211 = smul.addr %s210, 64
          %s212 = scalar_lea.vmem [#allocation2], %s211
          %s213 = smul.u32 8, %s18
          %s215 = ssub.s32 1024, 1024
          %216 = vsyncadd %s209, %s215
          %s217 = smul.addr %s213, 128
          %s218 = scalar_lea.hbm %s0, %s217
          %s219 = sshll.u32 %s212, 4
          %s220 = int_to_ptr.vmem [resolvable:$true] %s219
          %225 = dma.hbm_to_vmem [thread:$0]  %s218, 1024, %s220, %s209, 128, 128, 8
        $region36: #{tpu_custom_call.1} parent=31 // pred_fallthru
          _
      $region32: #{tpu_custom_call.1} parent=5 // pred_fallthru
        _
      %p226 = scmp.le.s32.totalorder 1, %s18
      %p227 = scmp.lt.s32.totalorder %s18, 3
      %p228 = pnand %p226, %p227
      %p229 = pneg %p228
      // Predicated region
      $region37: #{tpu_custom_call.1} parent=5 // pred_check
        _
      $region38: #{tpu_custom_call.1} parent=5 // pred_check_branch
        %231 = sbr.rel (%p228) target = $region40
      $region39: #{tpu_custom_call.1} parent=5 // pred_region
        %s232 = ssub.s32 %s18, 1
        %s233 = sand.u32 %s31, 1
        %s234 = scalar_lea.sflag [#allocation3], %s233
        %s235 = sand.u32 %s31, 1
        %s236 = smul.addr %s235, 64
        %s237 = scalar_lea.vmem [#allocation2], %s236
        // Predicated region
        $region41: #{tpu_custom_call.1} parent=39 // pred_check
          %p238 = pneg %p44
        $region42: #{tpu_custom_call.1} parent=39 // pred_check_branch
          %240 = sbr.rel (%p238) target = $region44
        $region43: #{tpu_custom_call.1} parent=39 // pred_region
          %241 = dma.done %s234, 1024
        $region44: #{tpu_custom_call.1} parent=39 // pred_fallthru
          _
        // Predicated region
        $region45: #{tpu_custom_call.1} parent=39 // pred_check
          %p242 = pneg %p65
        $region46: #{tpu_custom_call.1} parent=39 // pred_check_branch
          %244 = sbr.rel (%p242) target = $region48
        $region47: #{tpu_custom_call.1} parent=39 // pred_region
          %245 = dma.done [#allocation6], 2560
        $region48: #{tpu_custom_call.1} parent=39 // pred_fallthru
          _
        // Predicated region
        $region49: #{tpu_custom_call.1} parent=39 // pred_check
          %p246 = pneg %p107
        $region50: #{tpu_custom_call.1} parent=39 // pred_check_branch
          %248 = sbr.rel (%p246) target = $region52
        $region51: #{tpu_custom_call.1} parent=39 // pred_region
          %249 = dma.done [#allocation6], 2560
        $region52: #{tpu_custom_call.1} parent=39 // pred_fallthru
          _
        %s250 = sand.u32 %s31, 1
        %s251 = scalar_lea.sflag [#allocation3], %s250
        %s252 = sand.u32 %s31, 1
        %s253 = smul.addr %s252, 64
        %s254 = scalar_lea.vmem [#allocation2], %s253
        %p255 = pneg %p44
        %p256 = pneg %p41
        %p257 = pneg %p65
        %p258 = pneg %p62
        %p259 = pneg %p86
        %p260 = pneg %p83
        %p261 = pneg %p107
        %p262 = pneg %p104
        %p263 = pneg %p128
        %p264 = pneg %p125
        %p265 = pneg %p154
        %p266 = pneg %p151
        %s267 = sand.u32 %s141, 1
        %s268 = scalar_lea.sflag [#allocation4], %s267
        %s269 = sand.u32 %s141, 1
        %s270 = smul.addr %s269, 64
        %s271 = scalar_lea.vmem [#allocation8], %s270
        %s272 = smul.u32 8, %s23
        %s273 = smul.u32 8, %s23
        %v275 = vld [vmem:[%s237] sm:$0xff]
        %v276 = vld [vmem:[%s237 + $0x8] sm:$0xff]
        %v277 = vld [vmem:[%s237 + $0x10] sm:$0xff]
        %v278 = vld [vmem:[%s237 + $0x18] sm:$0xff]
        %v279 = vld [vmem:[%s237 + $0x20] sm:$0xff]
        %v280 = vld [vmem:[%s237 + $0x28] sm:$0xff]
        %v281 = vld [vmem:[%s237 + $0x30] sm:$0xff]
        %v282 = vld [vmem:[%s237 + $0x38] sm:$0xff]
        %v283 = vpack.c.bf16 %v276, %v275
        %v284 = vpack.c.bf16 %v278, %v277
        %v285 = vpack.c.bf16 %v280, %v279
        %v286 = vpack.c.bf16 %v282, %v281
        %v287 = vld [vmem:[#allocation5] sm:$0xf]
        %v288 = vld [vmem:[#allocation5 + $0x4] sm:$0xf]
        %v289 = vld [vmem:[#allocation5 + $0x8] sm:$0xf]
        %v290 = vld [vmem:[#allocation5 + $0xc] sm:$0xf]
        %v291 = vld [vmem:[#allocation5 + $0x10] sm:$0xf]
        %v292 = vld [vmem:[#allocation5 + $0x14] sm:$0xf]
        %v293 = vld [vmem:[#allocation5 + $0x18] sm:$0xf]
        %v294 = vld [vmem:[#allocation5 + $0x1c] sm:$0xf]
        %v295 = vld [vmem:[#allocation5 + $0x20] sm:$0xf]
        %v296 = vld [vmem:[#allocation5 + $0x24] sm:$0xf]
        %v297 = vld [vmem:[#allocation5 + $0x28] sm:$0xf]
        %v298 = vld [vmem:[#allocation5 + $0x2c] sm:$0xf]
        %v299 = vld [vmem:[#allocation5 + $0x30] sm:$0xf]
        %v300 = vld [vmem:[#allocation5 + $0x34] sm:$0xf]
        %v301 = vld [vmem:[#allocation5 + $0x38] sm:$0xf]
        %v302 = vld [vmem:[#allocation5 + $0x3c] sm:$0xf]
        %v303 = vld [vmem:[#allocation5 + $0x40] sm:$0xf]
        %v304 = vld [vmem:[#allocation5 + $0x44] sm:$0xf]
        %v305 = vld [vmem:[#allocation5 + $0x48] sm:$0xf]
        %v306 = vld [vmem:[#allocation5 + $0x4c] sm:$0xf]
        %v307 = vld [vmem:[#allocation5 + $0x50] sm:$0xf]
        %v308 = vld [vmem:[#allocation5 + $0x54] sm:$0xf]
        %v309 = vld [vmem:[#allocation5 + $0x58] sm:$0xf]
        %v310 = vld [vmem:[#allocation5 + $0x5c] sm:$0xf]
        %v311 = vld [vmem:[#allocation5 + $0x60] sm:$0xf]
        %v312 = vld [vmem:[#allocation5 + $0x64] sm:$0xf]
        %v313 = vld [vmem:[#allocation5 + $0x68] sm:$0xf]
        %v314 = vld [vmem:[#allocation5 + $0x6c] sm:$0xf]
        %v315 = vld [vmem:[#allocation5 + $0x70] sm:$0xf]
        %v316 = vld [vmem:[#allocation5 + $0x74] sm:$0xf]
        %v317 = vld [vmem:[#allocation5 + $0x78] sm:$0xf]
        %v318 = vld [vmem:[#allocation5 + $0x7c] sm:$0xf]
        %v319 = vld [vmem:[#allocation5 + $0x80] sm:$0xf]
        %v320 = vld [vmem:[#allocation5 + $0x84] sm:$0xf]
        %v321 = vld [vmem:[#allocation5 + $0x88] sm:$0xf]
        %v322 = vld [vmem:[#allocation5 + $0x8c] sm:$0xf]
        %v323 = vld [vmem:[#allocation5 + $0x90] sm:$0xf]
        %v324 = vld [vmem:[#allocation5 + $0x94] sm:$0xf]
        %v325 = vld [vmem:[#allocation5 + $0x98] sm:$0xf]
        %v326 = vld [vmem:[#allocation5 + $0x9c] sm:$0xf]
        %v327 = vld [vmem:[%s2] sm:$0x7]
        %v329 = vlaneseq
        %v330 = vshrl.u32 %v329, 7
        %v331 = vsub.s32 0, %v330
        %v332 = vrot.slane %v327, %v331
        %v333 = vlaneseq
        %v334 = vshrl.u32 %v333, 7
        %v335 = vsub.s32 1, %v334
        %v336 = vrot.slane %v327, %v335
        %v337 = vlaneseq
        %v338 = vshrl.u32 %v337, 7
        %v339 = vsub.s32 2, %v338
        %v340 = vrot.slane %v327, %v339
        %v384 = vunpack.c.l.b16 %v287
        %v385 = vunpack.c.l.b16 %v288
        %v386 = vunpack.c.l.b16 %v289
        %v387 = vunpack.c.l.b16 %v290
        %v388 = vunpack.c.l.b16 %v291
        %v389 = vunpack.c.l.b16 %v292
        %v390 = vunpack.c.l.b16 %v293
        %v391 = vunpack.c.l.b16 %v294
        %v392 = vunpack.c.l.b16 %v295
        %v393 = vunpack.c.l.b16 %v296
        %v394 = vunpack.c.l.b16 %v297
        %v395 = vunpack.c.l.b16 %v298
        %v396 = vunpack.c.l.b16 %v299
        %v397 = vunpack.c.l.b16 %v300
        %v398 = vunpack.c.l.b16 %v301
        %v399 = vunpack.c.l.b16 %v302
        %v400 = vunpack.c.l.b16 %v303
        %v401 = vunpack.c.l.b16 %v304
        %v402 = vunpack.c.l.b16 %v305
        %v403 = vunpack.c.l.b16 %v306
        %v404 = vunpack.c.l.b16 %v307
        %v405 = vunpack.c.l.b16 %v308
        %v406 = vunpack.c.l.b16 %v309
        %v407 = vunpack.c.l.b16 %v310
        %v408 = vunpack.c.l.b16 %v311
        %v409 = vunpack.c.l.b16 %v312
        %v410 = vunpack.c.l.b16 %v313
        %v411 = vunpack.c.l.b16 %v314
        %v412 = vunpack.c.l.b16 %v315
        %v413 = vunpack.c.l.b16 %v316
        %v414 = vunpack.c.l.b16 %v317
        %v415 = vunpack.c.l.b16 %v318
        %v416 = vunpack.c.l.b16 %v319
        %v417 = vunpack.c.l.b16 %v320
        %v418 = vunpack.c.l.b16 %v321
        %v419 = vunpack.c.l.b16 %v322
        %v420 = vunpack.c.l.b16 %v323
        %v421 = vunpack.c.l.b16 %v324
        %v422 = vunpack.c.l.b16 %v325
        %v423 = vunpack.c.l.b16 %v326
        %v424 = vpack.c.b16 %v385, %v384
        %v425 = vpack.c.b16 %v387, %v386
        %v426 = vpack.c.b16 %v389, %v388
        %v427 = vpack.c.b16 %v391, %v390
        %v428 = vpack.c.b16 %v393, %v392
        %v429 = vpack.c.b16 %v395, %v394
        %v430 = vpack.c.b16 %v397, %v396
        %v431 = vpack.c.b16 %v399, %v398
        %v432 = vpack.c.b16 %v401, %v400
        %v433 = vpack.c.b16 %v403, %v402
        %v434 = vpack.c.b16 %v405, %v404
        %v435 = vpack.c.b16 %v407, %v406
        %v436 = vpack.c.b16 %v409, %v408
        %v437 = vpack.c.b16 %v411, %v410
        %v438 = vpack.c.b16 %v413, %v412
        %v439 = vpack.c.b16 %v415, %v414
        %v440 = vpack.c.b16 %v417, %v416
        %v441 = vpack.c.b16 %v419, %v418
        %v442 = vpack.c.b16 %v421, %v420
        %v443 = vpack.c.b16 %v423, %v422
        %464 = vmatprep.subr.bf16.mxu0 0
        %465 = vmatpush1.bf16.xpose.msra.mxu0 %v431
        %466 = vmatprep.subr.bf16.mxu0 0
        %467 = vmatpush1.bf16.xpose.msra.mxu0 %v430
        %468 = vmatprep.subr.bf16.mxu0 0
        %469 = vmatpush1.bf16.xpose.msra.mxu0 %v429
        %470 = vmatprep.subr.bf16.mxu0 0
        %471 = vmatpush1.bf16.xpose.msra.mxu0 %v428
        %472 = vmatprep.subr.bf16.mxu0 0
        %473 = vmatpush1.bf16.xpose.msra.mxu0 %v427
        %474 = vmatprep.subr.bf16.mxu0 0
        %475 = vmatpush1.bf16.xpose.msra.mxu0 %v426
        %476 = vmatprep.subr.bf16.mxu0 0
        %477 = vmatpush1.bf16.xpose.msra.mxu0 %v425
        %478 = vmatprep.subr.bf16.mxu0 0
        %479 = vmatpush1.bf16.xpose.msra.mxu0 %v424
        %480 = vmatprep.subr.bf16.mxu0 0
        %481 = vmatpush2.bf16.xpose.msra.mxu0 %v439
        %482 = vmatprep.subr.bf16.mxu0 0
        %483 = vmatpush2.bf16.xpose.msra.mxu0 %v438
        %484 = vmatprep.subr.bf16.mxu0 0
        %485 = vmatpush2.bf16.xpose.msra.mxu0 %v437
        %486 = vmatprep.subr.bf16.mxu0 0
        %487 = vmatpush2.bf16.xpose.msra.mxu0 %v436
        %488 = vmatprep.subr.bf16.mxu0 0
        %489 = vmatpush2.bf16.xpose.msra.mxu0 %v435
        %490 = vmatprep.subr.bf16.mxu0 0
        %491 = vmatpush2.bf16.xpose.msra.mxu0 %v434
        %492 = vmatprep.subr.bf16.mxu0 0
        %493 = vmatpush2.bf16.xpose.msra.mxu0 %v433
        %494 = vmatprep.subr.bf16.mxu0 0
        %495 = vmatpush2.bf16.xpose.msra.mxu0 %v432
        %496 = vmatprep.mubr.bf16.mxu0 0
        %497 = vmatmul.mubr.bf16.gmra.mxu0 %v283
        %v498 = vpop.f32.mrf.mxu0
        %v499 = vadd.f32 %v332, %v498
        %v500 = vpop.f32.mrf.mxu0
        %v501 = vadd.f32 %v336, %v500
        %v502 = vpop.f32.mrf.mxu0
        %v503 = vadd.f32 %v332, %v502
        %v504 = vpop.f32.mrf.mxu0
        %v505 = vadd.f32 %v336, %v504
        %506 = vmatprep.mubr.bf16.mxu0 0
        %507 = vmatmul.mubr.bf16.gmra.mxu0 %v284
        %v508 = vpop.f32.mrf.mxu0
        %v509 = vadd.f32 %v332, %v508
        %v510 = vpop.f32.mrf.mxu0
        %v511 = vadd.f32 %v336, %v510
        %v512 = vpop.f32.mrf.mxu0
        %v513 = vadd.f32 %v332, %v512
        %v514 = vpop.f32.mrf.mxu0
        %v515 = vadd.f32 %v336, %v514
        %516 = vmatprep.mubr.bf16.mxu0 0
        %517 = vmatmul.mubr.bf16.gmra.mxu0 %v285
        %v518 = vpop.f32.mrf.mxu0
        %v519 = vadd.f32 %v332, %v518
        %v520 = vpop.f32.mrf.mxu0
        %v521 = vadd.f32 %v336, %v520
        %v522 = vpop.f32.mrf.mxu0
        %v523 = vadd.f32 %v332, %v522
        %v524 = vpop.f32.mrf.mxu0
        %v525 = vadd.f32 %v336, %v524
        %526 = vmatprep.mubr.bf16.mxu0 0
        %527 = vmatmul.mubr.bf16.gmra.mxu0 %v286
        %v528 = vpop.f32.mrf.mxu0
        %v529 = vadd.f32 %v332, %v528
        %v530 = vpop.f32.mrf.mxu0
        %v531 = vadd.f32 %v336, %v530
        %v532 = vpop.f32.mrf.mxu0
        %v533 = vadd.f32 %v332, %v532
        %v534 = vpop.f32.mrf.mxu0
        %v535 = vadd.f32 %v336, %v534
        %536 = vdwg.mxu0
        %537 = vmatprep.subr.bf16.mxu0 0
        %538 = vmatpush1.bf16.xpose.msra.mxu0 0
        %539 = vmatprep.subr.bf16.mxu0 0
        %540 = vmatpush1.bf16.xpose.msra.mxu0 0
        %541 = vmatprep.subr.bf16.mxu0 0
        %542 = vmatpush1.bf16.xpose.msra.mxu0 0
        %543 = vmatprep.subr.bf16.mxu0 0
        %544 = vmatpush1.bf16.xpose.msra.mxu0 0
        %545 = vmatprep.subr.bf16.mxu0 0
        %546 = vmatpush1.bf16.xpose.msra.mxu0 %v443
        %547 = vmatprep.subr.bf16.mxu0 0
        %548 = vmatpush1.bf16.xpose.msra.mxu0 %v442
        %549 = vmatprep.subr.bf16.mxu0 0
        %550 = vmatpush1.bf16.xpose.msra.mxu0 %v441
        %551 = vmatprep.subr.bf16.mxu0 0
        %552 = vmatpush1.bf16.xpose.msra.mxu0 %v440
        %553 = vmatprep.subr.bf16.mxu0 0
        %554 = vmatpush2.bf16.xpose.msra.mxu0 0
        %555 = vmatprep.subr.bf16.mxu0 0
        %556 = vmatpush2.bf16.xpose.msra.mxu0 0
        %557 = vmatprep.subr.bf16.mxu0 0
        %558 = vmatpush2.bf16.xpose.msra.mxu0 0
        %559 = vmatprep.subr.bf16.mxu0 0
        %560 = vmatpush2.bf16.xpose.msra.mxu0 0
        %561 = vmatprep.subr.bf16.mxu0 0
        %562 = vmatpush2.bf16.xpose.msra.mxu0 0
        %563 = vmatprep.subr.bf16.mxu0 0
        %564 = vmatpush2.bf16.xpose.msra.mxu0 0
        %565 = vmatprep.subr.bf16.mxu0 0
        %566 = vmatpush2.bf16.xpose.msra.mxu0 0
        %567 = vmatprep.subr.bf16.mxu0 0
        %568 = vmatpush2.bf16.xpose.msra.mxu0 0
        %569 = vmatprep.mubr.bf16.mxu0 0
        %570 = vmatmul.mubr.bf16.gmra.mxu0 %v283
        %v571 = vpop.f32.mrf.mxu0
        %v572 = vadd.f32 %v340, %v571
        %v573 = vpop.f32.mrf.mxu0
        %v574 = vpop.f32.mrf.mxu0
        %v575 = vadd.f32 %v340, %v574
        %v576 = vpop.f32.mrf.mxu0
        %577 = vmatprep.mubr.bf16.mxu0 0
        %578 = vmatmul.mubr.bf16.gmra.mxu0 %v284
        %v579 = vpop.f32.mrf.mxu0
        %v580 = vadd.f32 %v340, %v579
        %v581 = vpop.f32.mrf.mxu0
        %v582 = vpop.f32.mrf.mxu0
        %v583 = vadd.f32 %v340, %v582
        %v584 = vpop.f32.mrf.mxu0
        %585 = vmatprep.mubr.bf16.mxu0 0
        %586 = vmatmul.mubr.bf16.gmra.mxu0 %v285
        %v587 = vpop.f32.mrf.mxu0
        %v588 = vadd.f32 %v340, %v587
        %v589 = vpop.f32.mrf.mxu0
        %v590 = vpop.f32.mrf.mxu0
        %v591 = vadd.f32 %v340, %v590
        %v592 = vpop.f32.mrf.mxu0
        %593 = vmatprep.mubr.bf16.mxu0 0
        %594 = vmatmul.mubr.bf16.gmra.mxu0 %v286
        %v595 = vpop.f32.mrf.mxu0
        %v596 = vadd.f32 %v340, %v595
        %v597 = vpop.f32.mrf.mxu0
        %v598 = vpop.f32.mrf.mxu0
        %v599 = vadd.f32 %v340, %v598
        %v600 = vpop.f32.mrf.mxu0
        %601 = vdwg.mxu0
        %v602 = vmax.f32 %v499, 0.0
        %v603 = vmax.f32 %v501, 0.0
        %v604 = vmax.f32 %v572, 0.0
        %v605 = vmax.f32 %v503, 0.0
        %v606 = vmax.f32 %v505, 0.0
        %v607 = vmax.f32 %v575, 0.0
        %v608 = vmax.f32 %v509, 0.0
        %v609 = vmax.f32 %v511, 0.0
        %v610 = vmax.f32 %v580, 0.0
        %v611 = vmax.f32 %v513, 0.0
        %v612 = vmax.f32 %v515, 0.0
        %v613 = vmax.f32 %v583, 0.0
        %v614 = vmax.f32 %v519, 0.0
        %v615 = vmax.f32 %v521, 0.0
        %v616 = vmax.f32 %v588, 0.0
        %v617 = vmax.f32 %v523, 0.0
        %v618 = vmax.f32 %v525, 0.0
        %v619 = vmax.f32 %v591, 0.0
        %v620 = vmax.f32 %v529, 0.0
        %v621 = vmax.f32 %v531, 0.0
        %v622 = vmax.f32 %v596, 0.0
        %v623 = vmax.f32 %v533, 0.0
        %v624 = vmax.f32 %v535, 0.0
        %v625 = vmax.f32 %v599, 0.0
        %v626 = vpack.c.bf16 %v605, %v602
        %v627 = vpack.c.bf16 %v606, %v603
        %v628 = vpack.c.bf16 %v607, %v604
        %v629 = vpack.c.bf16 %v611, %v608
        %v630 = vpack.c.bf16 %v612, %v609
        %v631 = vpack.c.bf16 %v613, %v610
        %v632 = vpack.c.bf16 %v617, %v614
        %v633 = vpack.c.bf16 %v618, %v615
        %v634 = vpack.c.bf16 %v619, %v616
        %v635 = vpack.c.bf16 %v623, %v620
        %v636 = vpack.c.bf16 %v624, %v621
        %v637 = vpack.c.bf16 %v625, %v622
        %v638 = vld [vmem:[#allocation7] sm:$0xf]
        %v639 = vld [vmem:[#allocation7 + $0x4] sm:$0xf]
        %v640 = vld [vmem:[#allocation7 + $0x8] sm:$0xf]
        %v641 = vld [vmem:[#allocation7 + $0xc] sm:$0xf]
        %v642 = vld [vmem:[#allocation7 + $0x10] sm:$0xf]
        %v643 = vld [vmem:[#allocation7 + $0x14] sm:$0xf]
        %v644 = vld [vmem:[#allocation7 + $0x18] sm:$0xf]
        %v645 = vld [vmem:[#allocation7 + $0x1c] sm:$0xf]
        %v646 = vld [vmem:[#allocation7 + $0x20] sm:$0xf]
        %v647 = vld [vmem:[#allocation7 + $0x24] sm:$0xf]
        %v648 = vld [vmem:[#allocation7 + $0x28] sm:$0xf]
        %v649 = vld [vmem:[#allocation7 + $0x2c] sm:$0xf]
        %v650 = vld [vmem:[#allocation7 + $0x30] sm:$0xf]
        %v651 = vld [vmem:[#allocation7 + $0x34] sm:$0xf]
        %v652 = vld [vmem:[#allocation7 + $0x38] sm:$0xf]
        %v653 = vld [vmem:[#allocation7 + $0x3c] sm:$0xf]
        %v654 = vld [vmem:[#allocation7 + $0x40] sm:$0xf]
        %v655 = vld [vmem:[#allocation7 + $0x44] sm:$0xf]
        %v656 = vld [vmem:[#allocation7 + $0x48] sm:$0xf]
        %v657 = vld [vmem:[#allocation7 + $0x4c] sm:$0xf]
        %v658 = vld [vmem:[#allocation7 + $0x50] sm:$0xf]
        %v659 = vld [vmem:[#allocation7 + $0x54] sm:$0xf]
        %v660 = vld [vmem:[#allocation7 + $0x58] sm:$0xf]
        %v661 = vld [vmem:[#allocation7 + $0x5c] sm:$0xf]
        %v662 = vld [vmem:[#allocation7 + $0x60] sm:$0xf]
        %v663 = vld [vmem:[#allocation7 + $0x64] sm:$0xf]
        %v664 = vld [vmem:[#allocation7 + $0x68] sm:$0xf]
        %v665 = vld [vmem:[#allocation7 + $0x6c] sm:$0xf]
        %v666 = vld [vmem:[#allocation7 + $0x70] sm:$0xf]
        %v667 = vld [vmem:[#allocation7 + $0x74] sm:$0xf]
        %v668 = vld [vmem:[#allocation7 + $0x78] sm:$0xf]
        %v669 = vld [vmem:[#allocation7 + $0x7c] sm:$0xf]
        %v670 = vld [vmem:[#allocation7 + $0x80] sm:$0xf]
        %v671 = vld [vmem:[#allocation7 + $0x84] sm:$0xf]
        %v672 = vld [vmem:[#allocation7 + $0x88] sm:$0xf]
        %v673 = vld [vmem:[#allocation7 + $0x8c] sm:$0xf]
        %v674 = vld [vmem:[#allocation7 + $0x90] sm:$0xf]
        %v675 = vld [vmem:[#allocation7 + $0x94] sm:$0xf]
        %v676 = vld [vmem:[#allocation7 + $0x98] sm:$0xf]
        %v677 = vld [vmem:[#allocation7 + $0x9c] sm:$0xf]
        %v678 = vld [vmem:[%s4] sm:$0x1]
        %v680 = vlaneseq
        %v681 = vshrl.u32 %v680, 7
        %v682 = vsub.s32 0, %v681
        %v683 = vrot.slane %v678, %v682
        %v725 = vunpack.c.l.b16 %v638
        %v726 = vunpack.c.l.b16 %v639
        %v727 = vunpack.c.l.b16 %v640
        %v728 = vunpack.c.l.b16 %v641
        %v729 = vunpack.c.l.b16 %v642
        %v730 = vunpack.c.l.b16 %v643
        %v731 = vunpack.c.l.b16 %v644
        %v732 = vunpack.c.l.b16 %v645
        %v733 = vunpack.c.l.b16 %v646
        %v734 = vunpack.c.l.b16 %v647
        %v735 = vunpack.c.l.b16 %v648
        %v736 = vunpack.c.l.b16 %v649
        %v737 = vunpack.c.l.b16 %v650
        %v738 = vunpack.c.l.b16 %v651
        %v739 = vunpack.c.l.b16 %v652
        %v740 = vunpack.c.l.b16 %v653
        %v741 = vunpack.c.l.b16 %v654
        %v742 = vunpack.c.l.b16 %v655
        %v743 = vunpack.c.l.b16 %v656
        %v744 = vunpack.c.l.b16 %v657
        %v745 = vunpack.c.l.b16 %v658
        %v746 = vunpack.c.l.b16 %v659
        %v747 = vunpack.c.l.b16 %v660
        %v748 = vunpack.c.l.b16 %v661
        %v749 = vunpack.c.l.b16 %v662
        %v750 = vunpack.c.l.b16 %v663
        %v751 = vunpack.c.l.b16 %v664
        %v752 = vunpack.c.l.b16 %v665
        %v753 = vunpack.c.l.b16 %v666
        %v754 = vunpack.c.l.b16 %v667
        %v755 = vunpack.c.l.b16 %v668
        %v756 = vunpack.c.l.b16 %v669
        %v757 = vunpack.c.l.b16 %v670
        %v758 = vunpack.c.l.b16 %v671
        %v759 = vunpack.c.l.b16 %v672
        %v760 = vunpack.c.l.b16 %v673
        %v761 = vunpack.c.l.b16 %v674
        %v762 = vunpack.c.l.b16 %v675
        %v763 = vunpack.c.l.b16 %v676
        %v764 = vunpack.c.l.b16 %v677
        %v765 = vpack.c.b16 %v726, %v725
        %v766 = vpack.c.b16 %v728, %v727
        %v767 = vpack.c.b16 %v730, %v729
        %v768 = vpack.c.b16 %v732, %v731
        %v769 = vpack.c.b16 %v734, %v733
        %v770 = vpack.c.b16 %v736, %v735
        %v771 = vpack.c.b16 %v738, %v737
        %v772 = vpack.c.b16 %v740, %v739
        %v773 = vpack.c.b16 %v742, %v741
        %v774 = vpack.c.b16 %v744, %v743
        %v775 = vpack.c.b16 %v746, %v745
        %v776 = vpack.c.b16 %v748, %v747
        %v777 = vpack.c.b16 %v750, %v749
        %v778 = vpack.c.b16 %v752, %v751
        %v779 = vpack.c.b16 %v754, %v753
        %v780 = vpack.c.b16 %v756, %v755
        %v781 = vpack.c.b16 %v758, %v757
        %v782 = vpack.c.b16 %v760, %v759
        %v783 = vpack.c.b16 %v762, %v761
        %v784 = vpack.c.b16 %v764, %v763
        %vm805 = vcmask 523264
        %v807 = vsel %vm805, %v628, 0
        %v810 = vsel %vm805, %v631, 0
        %v813 = vsel %vm805, %v634, 0
        %v816 = vsel %vm805, %v637, 0
        %818 = vmatprep.subr.bf16.mxu0 0
        %819 = vmatpush1.bf16.msra.mxu0 %v772
        %820 = vmatprep.subr.bf16.mxu0 0
        %821 = vmatpush1.bf16.msra.mxu0 %v771
        %822 = vmatprep.subr.bf16.mxu0 0
        %823 = vmatpush1.bf16.msra.mxu0 %v770
        %824 = vmatprep.subr.bf16.mxu0 0
        %825 = vmatpush1.bf16.msra.mxu0 %v769
        %826 = vmatprep.subr.bf16.mxu0 0
        %827 = vmatpush1.bf16.msra.mxu0 %v768
        %828 = vmatprep.subr.bf16.mxu0 0
        %829 = vmatpush1.bf16.msra.mxu0 %v767
        %830 = vmatprep.subr.bf16.mxu0 0
        %831 = vmatpush1.bf16.msra.mxu0 %v766
        %832 = vmatprep.subr.bf16.mxu0 0
        %833 = vmatpush1.bf16.msra.mxu0 %v765
        %834 = vmatprep.subr.bf16.mxu0 0
        %835 = vmatpush2.bf16.msra.mxu0 %v780
        %836 = vmatprep.subr.bf16.mxu0 0
        %837 = vmatpush2.bf16.msra.mxu0 %v779
        %838 = vmatprep.subr.bf16.mxu0 0
        %839 = vmatpush2.bf16.msra.mxu0 %v778
        %840 = vmatprep.subr.bf16.mxu0 0
        %841 = vmatpush2.bf16.msra.mxu0 %v777
        %842 = vmatprep.subr.bf16.mxu0 0
        %843 = vmatpush2.bf16.msra.mxu0 %v776
        %844 = vmatprep.subr.bf16.mxu0 0
        %845 = vmatpush2.bf16.msra.mxu0 %v775
        %846 = vmatprep.subr.bf16.mxu0 0
        %847 = vmatpush2.bf16.msra.mxu0 %v774
        %848 = vmatprep.subr.bf16.mxu0 0
        %849 = vmatpush2.bf16.msra.mxu0 %v773
        %850 = vmatprep.mubr.bf16.mxu0 %v627
        %851 = vmatmul.mubr.bf16.gmra.mxu0 %v626
        %v852 = vpop.f32.mrf.mxu0
        %v853 = vadd.f32 %v683, %v852
        %v854 = vpop.f32.mrf.mxu0
        %v855 = vpop.f32.mrf.mxu0
        %v856 = vadd.f32 %v683, %v855
        %v857 = vpop.f32.mrf.mxu0
        %858 = vmatprep.mubr.bf16.mxu0 %v630
        %859 = vmatmul.mubr.bf16.gmra.mxu0 %v629
        %v860 = vpop.f32.mrf.mxu0
        %v861 = vadd.f32 %v683, %v860
        %v862 = vpop.f32.mrf.mxu0
        %v863 = vpop.f32.mrf.mxu0
        %v864 = vadd.f32 %v683, %v863
        %v865 = vpop.f32.mrf.mxu0
        %866 = vmatprep.mubr.bf16.mxu0 %v633
        %867 = vmatmul.mubr.bf16.gmra.mxu0 %v632
        %v868 = vpop.f32.mrf.mxu0
        %v869 = vadd.f32 %v683, %v868
        %v870 = vpop.f32.mrf.mxu0
        %v871 = vpop.f32.mrf.mxu0
        %v872 = vadd.f32 %v683, %v871
        %v873 = vpop.f32.mrf.mxu0
        %874 = vmatprep.mubr.bf16.mxu0 %v636
        %875 = vmatmul.mubr.bf16.gmra.mxu0 %v635
        %v876 = vpop.f32.mrf.mxu0
        %v877 = vadd.f32 %v683, %v876
        %v878 = vpop.f32.mrf.mxu0
        %v879 = vpop.f32.mrf.mxu0
        %v880 = vadd.f32 %v683, %v879
        %v881 = vpop.f32.mrf.mxu0
        %882 = vdwg.mxu0
        %883 = vmatprep.subr.bf16.mxu0 0
        %884 = vmatpush1.bf16.msra.mxu0 0
        %885 = vmatprep.subr.bf16.mxu0 0
        %886 = vmatpush1.bf16.msra.mxu0 0
        %887 = vmatprep.subr.bf16.mxu0 0
        %888 = vmatpush1.bf16.msra.mxu0 0
        %889 = vmatprep.subr.bf16.mxu0 0
        %890 = vmatpush1.bf16.msra.mxu0 0
        %891 = vmatprep.subr.bf16.mxu0 0
        %892 = vmatpush1.bf16.msra.mxu0 %v784
        %893 = vmatprep.subr.bf16.mxu0 0
        %894 = vmatpush1.bf16.msra.mxu0 %v783
        %895 = vmatprep.subr.bf16.mxu0 0
        %896 = vmatpush1.bf16.msra.mxu0 %v782
        %897 = vmatprep.subr.bf16.mxu0 0
        %898 = vmatpush1.bf16.msra.mxu0 %v781
        %899 = vmatprep.subr.bf16.mxu0 0
        %900 = vmatpush2.bf16.msra.mxu0 0
        %901 = vmatprep.subr.bf16.mxu0 0
        %902 = vmatpush2.bf16.msra.mxu0 0
        %903 = vmatprep.subr.bf16.mxu0 0
        %904 = vmatpush2.bf16.msra.mxu0 0
        %905 = vmatprep.subr.bf16.mxu0 0
        %906 = vmatpush2.bf16.msra.mxu0 0
        %907 = vmatprep.subr.bf16.mxu0 0
        %908 = vmatpush2.bf16.msra.mxu0 0
        %909 = vmatprep.subr.bf16.mxu0 0
        %910 = vmatpush2.bf16.msra.mxu0 0
        %911 = vmatprep.subr.bf16.mxu0 0
        %912 = vmatpush2.bf16.msra.mxu0 0
        %913 = vmatprep.subr.bf16.mxu0 0
        %914 = vmatpush2.bf16.msra.mxu0 0
        %915 = vmatprep.mubr.bf16.mxu0 0
        %916 = vmatmul.mubr.bf16.gmra.mxu0 %v807
        %v917 = vpop.f32.mrf.mxu0
        %v918 = vadd.f32 %v853, %v917
        %v919 = vpop.f32.mrf.mxu0
        %v920 = vpop.f32.mrf.mxu0
        %v921 = vadd.f32 %v856, %v920
        %v922 = vpop.f32.mrf.mxu0
        %923 = vmatprep.mubr.bf16.mxu0 0
        %924 = vmatmul.mubr.bf16.gmra.mxu0 %v810
        %v925 = vpop.f32.mrf.mxu0
        %v926 = vadd.f32 %v861, %v925
        %v927 = vpop.f32.mrf.mxu0
        %v928 = vpop.f32.mrf.mxu0
        %v929 = vadd.f32 %v864, %v928
        %v930 = vpop.f32.mrf.mxu0
        %931 = vmatprep.mubr.bf16.mxu0 0
        %932 = vmatmul.mubr.bf16.gmra.mxu0 %v813
        %v933 = vpop.f32.mrf.mxu0
        %v934 = vadd.f32 %v869, %v933
        %v935 = vpop.f32.mrf.mxu0
        %v936 = vpop.f32.mrf.mxu0
        %v937 = vadd.f32 %v872, %v936
        %v938 = vpop.f32.mrf.mxu0
        %939 = vmatprep.mubr.bf16.mxu0 0
        %940 = vmatmul.mubr.bf16.gmra.mxu0 %v816
        %v941 = vpop.f32.mrf.mxu0
        %v942 = vadd.f32 %v877, %v941
        %v943 = vpop.f32.mrf.mxu0
        %v944 = vpop.f32.mrf.mxu0
        %v945 = vadd.f32 %v880, %v944
        %v946 = vpop.f32.mrf.mxu0
        %947 = vdwg.mxu0
        %948 = vst [vmem:[%s271] sm:$0xff] %v918
        %949 = vst [vmem:[%s271 + $0x8] sm:$0xff] %v921
        %950 = vst [vmem:[%s271 + $0x10] sm:$0xff] %v926
        %951 = vst [vmem:[%s271 + $0x18] sm:$0xff] %v929
        %952 = vst [vmem:[%s271 + $0x20] sm:$0xff] %v934
        %953 = vst [vmem:[%s271 + $0x28] sm:$0xff] %v937
        %954 = vst [vmem:[%s271 + $0x30] sm:$0xff] %v942
        %955 = vst [vmem:[%s271 + $0x38] sm:$0xff] %v945
        %s956 = sand.u32 %s141, 1
        %s957 = scalar_lea.sflag [#allocation4], %s956
        %s958 = sand.u32 %s141, 1
        %s959 = smul.addr %s958, 64
        %s960 = scalar_lea.vmem [#allocation8], %s959
        // Predicated region
        $region53: #{tpu_custom_call.1} parent=39 // pred_check
          %p961 = pneg %p151
        $region54: #{tpu_custom_call.1} parent=39 // pred_check_branch
          %963 = sbr.rel (%p961) target = $region56
        $region55: #{tpu_custom_call.1} parent=39 // pred_region
          %s964 = smul.u32 8, %s23
          %s966 = ssub.s32 1024, 1024
          %967 = vsyncadd %s957, %s966
          %s968 = smul.addr %s964, 128
          %s969 = scalar_lea.hbm %s5, %s968
          %s970 = sshll.u32 %s960, 4
          %s971 = int_to_ptr.vmem [resolvable:$true] %s970
          %976 = dma.vmem_to_hbm [thread:$0]  %s971, 1024, %s969, %s957, 128, 128, 8
        $region56: #{tpu_custom_call.1} parent=39 // pred_fallthru
          _
      $region40: #{tpu_custom_call.1} parent=5 // pred_fallthru
        _
      %p977 = scmp.le.s32.totalorder 2, %s18
      // Predicated region
      $region57: #{tpu_custom_call.1} parent=5 // pred_check
        %p978 = pneg %p977
      $region58: #{tpu_custom_call.1} parent=5 // pred_check_branch
        %980 = sbr.rel (%p978) target = $region60
      $region59: #{tpu_custom_call.1} parent=5 // pred_region
        %s981 = ssub.s32 %s18, 2
        // Predicated region
        $region61: #{tpu_custom_call.1} parent=59 // pred_check
          %p982 = pneg %p157
        $region62: #{tpu_custom_call.1} parent=59 // pred_check_branch
          %984 = sbr.rel (%p982) target = $region64
        $region63: #{tpu_custom_call.1} parent=59 // pred_region
          %s985 = sand.u32 %s142, 1
          %s986 = scalar_lea.sflag [#allocation4], %s985
          %s987 = sand.u32 %s142, 1
          %s988 = smul.addr %s987, 64
          %s989 = scalar_lea.vmem [#allocation8], %s988
          %990 = dma.done %s986, 1024
        $region64: #{tpu_custom_call.1} parent=59 // pred_fallthru
          _
      $region60: #{tpu_custom_call.1} parent=5 // pred_fallthru
        _
    $region6: #{tpu_custom_call.1} parent=1 // loop_footer
      %s22 = sadd.s32 1, %s18
    $region7: #{tpu_custom_call.1} parent=1 // loop_footer_branch
      %17 = sbr.rel target = $region3
    $region8: #{tpu_custom_call.1} parent=1 // loop_exit
      _
    %991 = vsyncpa [#allocation3], 1
    %s992 = scalar_lea.sflag [#allocation3], 1
    %993 = vsyncpa %s992, 1
    %994 = vsyncpa [#allocation6], 1
    %995 = vsyncpa [#allocation4], 1
    %s996 = scalar_lea.sflag [#allocation4], 1
    %997 = vsyncpa %s996, 1

</llo_original>
